<compile_context>
chip_gen: v5e
topology: v5e:2x2
jax: 0.10.0
libtpu: 0.0.40
codegen_flags: <defaults>
</compile_context>

<pallas_src>
import jax
import jax.numpy as jnp
from jax.experimental import pallas as pl
from jax.experimental.pallas import tpu as pltpu


def _round_up(x, m):
    return ((x + m - 1) // m) * m


def _pick_tk(d_in_pad):
    # Largest K tile <= 2048 that divides the padded reduction length.
    for cand in (2048, 1024, 512, 256, 128):
        if d_in_pad % cand == 0:
            return cand
    return 128  # unreachable: d_in_pad is a multiple of 128


# ---------------------------------------------------------------------------
# Kernels
# ---------------------------------------------------------------------------

def _fused_kernel_single(x_ref, wb_ref, bb_ref, wp_ref, bp_ref, o_ref):
    """Fast path: relu(x @ Wb + bb) @ Wp + bp in one grid step per batch tile.

    Grid: (batch tiles,) ["parallel"]. bf16 MXU operands, f32 accumulation,
    bias + ReLU epilogue in f32 on the VPU. x tile cast to bf16 in-kernel.
    """
    x = x_ref[...].astype(jnp.bfloat16)
    h = jnp.dot(x, wb_ref[...], preferred_element_type=jnp.float32)
    feat = jnp.maximum(h + bb_ref[...], 0.0)
    out = jnp.dot(feat.astype(jnp.bfloat16), wp_ref[...],
                  preferred_element_type=jnp.float32)
    o_ref[...] = (out + bp_ref[...]).astype(o_ref.dtype)


def _fused_kernel_ktiled(x_ref, wb_ref, bb_ref, wp_ref, bp_ref, o_ref, acc_ref):
    """K-tiled path for large d_in: f32 VMEM accumulator across the K axis.

    Grid: (batch tiles ["parallel"], K tiles over d_in ["arbitrary", last]).
    Accumulator is initialized with the backbone bias, so the epilogue is just
    ReLU + projection matmul + output bias.
    """
    k = pl.program_id(1)

    @pl.when(k == 0)
    def _():
        acc_ref[...] = jnp.broadcast_to(bb_ref[...], acc_ref.shape)

    acc_ref[...] += jnp.dot(x_ref[...].astype(jnp.bfloat16), wb_ref[...],
                            preferred_element_type=jnp.float32)

    @pl.when(k == pl.num_programs(1) - 1)
    def _():
        feat = jnp.maximum(acc_ref[...], 0.0)
        out = jnp.dot(feat.astype(jnp.bfloat16), wp_ref[...],
                      preferred_element_type=jnp.float32)
        o_ref[...] = (out + bp_ref[...]).astype(o_ref.dtype)


# ---------------------------------------------------------------------------
# Wrappers
# ---------------------------------------------------------------------------

def prepare_params(w_backbone, b_backbone, w_proj, b_proj):
    """One-time parameter preprocessing: pad to TPU tiles, cast weights to bf16.

    Hoisted out of the forward path so the f32->bf16 pad/cast HBM traffic is
    paid once per parameter set, not once per forward call.

    w_backbone: [d_in, d_feat]; b_backbone: [d_feat]
    w_proj:     [d_feat, num_class]; b_proj: [num_class]
    """
    d_in, d_feat = w_backbone.shape
    n_cls = w_proj.shape[1]
    d_in_pad = _round_up(d_in, 128)
    d_feat_pad = _round_up(d_feat, 128)
    n_pad = _round_up(n_cls, 128)  # lane-dense output block

    wb_p = jnp.pad(w_backbone,
                   ((0, d_in_pad - d_in), (0, d_feat_pad - d_feat))
                   ).astype(jnp.bfloat16)
    bb_p = jnp.pad(b_backbone, (0, d_feat_pad - d_feat)
                   ).reshape(1, d_feat_pad).astype(jnp.float32)
    wp_p = jnp.pad(w_proj,
                   ((0, d_feat_pad - d_feat), (0, n_pad - n_cls))
                   ).astype(jnp.bfloat16)
    bp_p = jnp.pad(b_proj, (0, n_pad - n_cls)
                   ).reshape(1, n_pad).astype(jnp.float32)
    return wb_p, bb_p, wp_p, bp_p


def model_wrapper_forward(x, params, num_class, force_ktiled=False):
    """x: [B, C, H, W] float32; params from prepare_params. Returns [B, num_class] f32."""
    wb_p, bb_p, wp_p, bp_p = params
    B = x.shape[0]
    d_in = x.shape[1] * x.shape[2] * x.shape[3]
    d_in_pad, d_feat_pad = wb_p.shape
    n_pad = wp_p.shape[1]

    # Batch tiling: fill the MXU M dimension (up to 128 rows), keep the grid's
    # leading axis "parallel" so v7x's second TensorCore gets work once B grows.
    TB = min(_round_up(B, 8), 128)
    B_pad = _round_up(B, TB)

    # x stays f32 (no padded bf16 copy); only zero-pad if misaligned.
    x_flat = x.reshape(B, d_in)
    if (B_pad, d_in_pad) != (B, d_in):
        x_flat = jnp.pad(x_flat, ((0, B_pad - B), (0, d_in_pad - d_in)))

    # VMEM footprint of the single-step path (double-buffered blocks + temps).
    single_step_bytes = 2 * (
        TB * d_in_pad * 4            # x tile (f32)
        + d_in_pad * d_feat_pad * 2  # Wb (bf16)
        + d_feat_pad * n_pad * 2     # Wp (bf16)
        + d_feat_pad * 4 + n_pad * 4  # biases (f32)
        + TB * n_pad * 4             # out tile (f32)
    ) + TB * d_feat_pad * 4          # feat temporary

    if (not force_ktiled) and single_step_bytes <= 8 * 1024 * 1024:
        # ---------------- fast path: no K axis, no accumulator ----------------
        out_padded = pl.pallas_call(
            _fused_kernel_single,
            out_shape=jax.ShapeDtypeStruct((B_pad, n_pad), jnp.float32),
            grid=(B_pad // TB,),
            in_specs=[
                pl.BlockSpec((TB, d_in_pad), lambda b: (b, 0)),            # x tile (f32)
                pl.BlockSpec((d_in_pad, d_feat_pad), lambda b: (0, 0)),    # Wb (bf16)
                pl.BlockSpec((1, d_feat_pad), lambda b: (0, 0)),           # bb
                pl.BlockSpec((d_feat_pad, n_pad), lambda b: (0, 0)),       # Wp (bf16)
                pl.BlockSpec((1, n_pad), lambda b: (0, 0)),                # bp
            ],
            out_specs=pl.BlockSpec((TB, n_pad), lambda b: (b, 0)),
            compiler_params=pltpu.CompilerParams(
                dimension_semantics=("parallel",)),
        )(x_flat, wb_p, bb_p, wp_p, bp_p)
        return out_padded[:B, :num_class]

    # ---------------- K-tiled path (reduction axis last in the grid) ----------------
    tk = _pick_tk(d_in_pad)
    ktiled_bytes = 2 * (
        TB * tk * 4
        + tk * d_feat_pad * 2
        + d_feat_pad * n_pad * 2
        + d_feat_pad * 4 + n_pad * 4
        + TB * n_pad * 4
    ) + 2 * TB * d_feat_pad * 4      # acc scratch + feat temporary
    vmem_limit = None
    if ktiled_bytes > 12 * 1024 * 1024:
        # Raise the scoped VMEM limit (16 MiB default on v5e), stay well under
        # v7x's 64 MiB physical VMEM.
        vmem_limit = min(int(ktiled_bytes * 3 // 2), 48 * 1024 * 1024)

    out_padded = pl.pallas_call(
        _fused_kernel_ktiled,
        out_shape=jax.ShapeDtypeStruct((B_pad, n_pad), jnp.float32),
        grid=(B_pad // TB, d_in_pad // tk),
        in_specs=[
            pl.BlockSpec((TB, tk), lambda b, k: (b, k)),                 # x K-tile (f32)
            pl.BlockSpec((tk, d_feat_pad), lambda b, k: (k, 0)),         # Wb K-tile (bf16)
            pl.BlockSpec((1, d_feat_pad), lambda b, k: (0, 0)),          # bb (resident)
            pl.BlockSpec((d_feat_pad, n_pad), lambda b, k: (0, 0)),      # Wp (resident)
            pl.BlockSpec((1, n_pad), lambda b, k: (0, 0)),               # bp (resident)
        ],
        out_specs=pl.BlockSpec((TB, n_pad), lambda b, k: (b, 0)),
        scratch_shapes=[pltpu.VMEM((TB, d_feat_pad), jnp.float32)],
        compiler_params=pltpu.CompilerParams(
            dimension_semantics=("parallel", "arbitrary"),
            vmem_limit_bytes=vmem_limit),
    )(x_flat, wb_p, bb_p, wp_p, bp_p)
    return out_padded[:B, :num_class]


if __name__ == "__main__":
    # Small shapes consistent with the module's forward:
    #   x: [B=2, C=4, H=16, W=16]  -> flattened D_in = 1024
    #   backbone_output_dim = 256, num_class = 32
    B, C, H, W = 2, 4, 16, 16
    D_IN = C * H * W
    BACKBONE_OUT = 256
    NUM_CLASS = 32

    key = jax.random.PRNGKey(0)
    kx, kwb, kbb, kwp, kbp = jax.random.split(key, 5)

    x = jax.random.normal(kx, (B, C, H, W), dtype=jnp.float32)

    # Parameters stored directly as [in, out]; equivalent to PyTorch's
    # x @ W.T + b with W of shape [out, in].
    w_backbone = jax.random.normal(kwb, (D_IN, BACKBONE_OUT), dtype=jnp.float32) * 0.02
    b_backbone = jax.random.normal(kbb, (BACKBONE_OUT,), dtype=jnp.float32) * 0.02
    w_proj = jax.random.normal(kwp, (BACKBONE_OUT, NUM_CLASS), dtype=jnp.float32) * 0.02
    b_proj = jax.random.normal(kbp, (NUM_CLASS,), dtype=jnp.float32) * 0.02

    # One-time parameter preparation (hoisted out of the per-call path).
    params = prepare_params(w_backbone, b_backbone, w_proj, b_proj)

    fwd = jax.jit(model_wrapper_forward, static_argnums=(2, 3))

    # Fast (single-step) path — the one these shapes actually use.
    out = jax.block_until_ready(fwd(x, params, NUM_CLASS, False))
    # Also exercise the K-tiled accumulator path to keep it compiled/validated.
    out_k = jax.block_until_ready(fwd(x, params, NUM_CLASS, True))

    # Pure-JAX f32 reference; tolerance loosened for the bf16 MXU path
    # (bf16 operands, f32 accumulation).
    ref = jnp.maximum(x.reshape(B, D_IN) @ w_backbone + b_backbone, 0.0) @ w_proj + b_proj
    assert out.shape == (B, NUM_CLASS)
    assert out_k.shape == (B, NUM_CLASS)
    assert jnp.allclose(out, ref, atol=3e-2, rtol=3e-2)
    assert jnp.allclose(out_k, ref, atol=3e-2, rtol=3e-2)

    print("KERNEL_OK")
</pallas_src>

<mosaic_0001>
module attributes {stable_mosaic.version = 11 : i64} {
  func.func @_fused_kernel_single(%arg0: i32, %arg1: memref<8x1024xf32, #tpu.memory_space<vmem>>, %arg2: memref<1024x256xbf16, #tpu.memory_space<vmem>>, %arg3: memref<1x256xf32, #tpu.memory_space<vmem>>, %arg4: memref<256x128xbf16, #tpu.memory_space<vmem>>, %arg5: memref<1x128xf32, #tpu.memory_space<vmem>>, %arg6: memref<8x128xf32, #tpu.memory_space<vmem>>) attributes {dimension_semantics = [#tpu.dimension_semantics<parallel>], iteration_bounds = array<i64: 1>, scalar_prefetch = 0 : i64, scratch_operands = 0 : i64, tpu.core_type = #tpu.core_type<tc>, window_params = [{transform_indices = @transform_0, window_bounds = array<i64: 8, 1024>}, {pipeline_mode = #tpu.pipeline_mode<synchronous>, transform_indices = @transform_1, window_bounds = array<i64: 1024, 256>}, {pipeline_mode = #tpu.pipeline_mode<synchronous>, transform_indices = @transform_2, window_bounds = array<i64: 1, 256>}, {pipeline_mode = #tpu.pipeline_mode<synchronous>, transform_indices = @transform_3, window_bounds = array<i64: 256, 128>}, {pipeline_mode = #tpu.pipeline_mode<synchronous>, transform_indices = @transform_4, window_bounds = array<i64: 1, 128>}, {transform_indices = @transform_5, window_bounds = array<i64: 8, 128>}]} {
    %c0 = arith.constant 0 : index
    %c0_0 = arith.constant 0 : index
    %0 = vector.load %arg1[%c0, %c0_0] : memref<8x1024xf32, #tpu.memory_space<vmem>>, vector<8x1024xf32>
    %1 = arith.truncf %0 : vector<8x1024xf32> to vector<8x1024xbf16>
    %c0_1 = arith.constant 0 : index
    %c0_2 = arith.constant 0 : index
    %2 = vector.load %arg2[%c0_1, %c0_2] : memref<1024x256xbf16, #tpu.memory_space<vmem>>, vector<1024x256xbf16>
    %cst = arith.constant dense<0.000000e+00> : vector<8x256xf32>
    %3 = tpu.matmul %1, %2, %cst {dimension_numbers = #tpu.dot_dimension_numbers<[1], [0], [0], [1], [0, 0, 1, 1], [], []>} : vector<8x1024xbf16>, vector<1024x256xbf16>, vector<8x256xf32> -> vector<8x256xf32>
    %c0_3 = arith.constant 0 : index
    %c0_4 = arith.constant 0 : index
    %4 = vector.load %arg3[%c0_3, %c0_4] : memref<1x256xf32, #tpu.memory_space<vmem>>, vector<1x256xf32>
    %5 = vector.broadcast %4 : vector<1x256xf32> to vector<8x256xf32>
    %6 = arith.addf %3, %5 : vector<8x256xf32>
    %cst_5 = arith.constant 0.000000e+00 : f32
    %7 = vector.broadcast %cst_5 : f32 to vector<8x256xf32>
    %8 = arith.maximumf %6, %7 : vector<8x256xf32>
    %9 = arith.truncf %8 : vector<8x256xf32> to vector<8x256xbf16>
    %c0_6 = arith.constant 0 : index
    %c0_7 = arith.constant 0 : index
    %10 = vector.load %arg4[%c0_6, %c0_7] : memref<256x128xbf16, #tpu.memory_space<vmem>>, vector<256x128xbf16>
    %cst_8 = arith.constant dense<0.000000e+00> : vector<8x128xf32>
    %11 = tpu.matmul %9, %10, %cst_8 {dimension_numbers = #tpu.dot_dimension_numbers<[1], [0], [0], [1], [0, 0, 1, 1], [], []>} : vector<8x256xbf16>, vector<256x128xbf16>, vector<8x128xf32> -> vector<8x128xf32>
    %c0_9 = arith.constant 0 : index
    %c0_10 = arith.constant 0 : index
    %12 = vector.load %arg5[%c0_9, %c0_10] : memref<1x128xf32, #tpu.memory_space<vmem>>, vector<1x128xf32>
    %13 = vector.broadcast %12 : vector<1x128xf32> to vector<8x128xf32>
    %14 = arith.addf %11, %13 : vector<8x128xf32>
    %c0_11 = arith.constant 0 : index
    %c0_12 = arith.constant 0 : index
    %15 = vector.load %arg6[%c0_11, %c0_12] : memref<8x128xf32, #tpu.memory_space<vmem>>, vector<8x128xf32>
    tpu.vector_store %arg6[%c0_11, %c0_12], %14 {strides = array<i32>} : memref<8x128xf32, #tpu.memory_space<vmem>>, vector<8x128xf32>,
    return
  }
  func.func @transform_0(%arg0: i32) -> (i32, i32) {
    %c0_i32 = arith.constant 0 : i32
    %c0_i32_0 = arith.constant 0 : i32
    return %arg0, %c0_i32 : i32, i32
  }
  func.func @transform_1(%arg0: i32) -> (i32, i32) {
    %c0_i32 = arith.constant 0 : i32
    %c0_i32_0 = arith.constant 0 : i32
    %c0_i32_1 = arith.constant 0 : i32
    return %c0_i32, %c0_i32_0 : i32, i32
  }
  func.func @transform_2(%arg0: i32) -> (i32, i32) {
    %c0_i32 = arith.constant 0 : i32
    %c0_i32_0 = arith.constant 0 : i32
    %c0_i32_1 = arith.constant 0 : i32
    return %c0_i32, %c0_i32_0 : i32, i32
  }
  func.func @transform_3(%arg0: i32) -> (i32, i32) {
    %c0_i32 = arith.constant 0 : i32
    %c0_i32_0 = arith.constant 0 : i32
    %c0_i32_1 = arith.constant 0 : i32
    return %c0_i32, %c0_i32_0 : i32, i32
  }
  func.func @transform_4(%arg0: i32) -> (i32, i32) {
    %c0_i32 = arith.constant 0 : i32
    %c0_i32_0 = arith.constant 0 : i32
    %c0_i32_1 = arith.constant 0 : i32
    return %c0_i32, %c0_i32_0 : i32, i32
  }
  func.func @transform_5(%arg0: i32) -> (i32, i32) {
    %c0_i32 = arith.constant 0 : i32
    %c0_i32_0 = arith.constant 0 : i32
    return %arg0, %c0_i32 : i32, i32
  }
}

</mosaic_0001>

<llo_original>
// kernel: model_wrapper_forward.1
$region0: #{model_wrapper_forward.1}
  #allocation0 [shape = 'u32[]', space=smem, size = 0x4, offset = 0x4, fixed_abs, tag = 'smem constant byte address 0x4 - core index']
  #allocation1 [shape = 'u32[72,128]{1,0:T(1,128)}', space=vmem, size = 0x9000, scoped, tag = 'internal scratch']
  %s0 = inlined_call_operand.vmem [shape: f32[8,1024], index: 0, kind: input, shape index: {}]
  %s1 = inlined_call_operand.hbm [shape: bf16[1024,256], index: 1, kind: input, shape index: {}]
  %s2 = inlined_call_operand.vmem [shape: f32[1,256], index: 2, kind: input, shape index: {}]
  %s3 = inlined_call_operand.vmem [shape: bf16[256,128], index: 3, kind: input, shape index: {}]
  %s4 = inlined_call_operand.vmem [shape: f32[1,128], index: 4, kind: input, shape index: {}]
  %s5 = inlined_call_operand.vmem [shape: f32[8,128], index: 5, kind: output, shape index: {}]
  %s6 = sld [smem:[#allocation0]]
  $region34: #{model_wrapper_forward.1} parent=0
    _
  %s8 = ssub.s32 1, %s6
  %s9 = scalar_select 0, %s8, %s6
  $region1: #{model_wrapper_forward.1} parent=0
    #allocation2 [shape = 'u8[524288]{0}', space=vmem, size = 0x80000, scoped, tag = 'input window, operand 1, single buffered']
    #allocation3 [shape = 's32[1]{0}', space=sflag, size = 0x4, scoped, tag = 'scoped memory for model_wrapper_forward.1']
    %10 = vsyncpa [#allocation3], 0
    // Predicated region
    $region2: #{model_wrapper_forward.1} parent=1 // pred_check
      _
    $region3: #{model_wrapper_forward.1} parent=1 // pred_check_branch
      %12 = sbr.rel (0) target = $region5
    $region4: #{model_wrapper_forward.1} parent=1 // pred_region
      _
    $region5: #{model_wrapper_forward.1} parent=1 // pred_fallthru
      _
    // Predicated region
    $region6: #{model_wrapper_forward.1} parent=1 // pred_check
      _
    $region7: #{model_wrapper_forward.1} parent=1 // pred_check_branch
      %14 = sbr.rel (0) target = $region9
    $region8: #{model_wrapper_forward.1} parent=1 // pred_region
      %16 = vsyncadd [#allocation3], 0
      %s17 = sshll.u32 %s1, 4
      %s18 = int_to_ptr.hbm [resolvable:$true] %s17
      %s19 = sshll.u32 [#allocation2], 4
      %s20 = int_to_ptr.vmem [resolvable:$true] %s19
      %25 = dma.hbm_to_vmem [thread:$0]  %s18, 16384, %s20, [#allocation3], 128, 128, 8
    $region9: #{model_wrapper_forward.1} parent=1 // pred_fallthru
      _
    // Predicated region
    $region10: #{model_wrapper_forward.1} parent=1 // pred_check
      _
    $region11: #{model_wrapper_forward.1} parent=1 // pred_check_branch
      %27 = sbr.rel (0) target = $region13
    $region12: #{model_wrapper_forward.1} parent=1 // pred_region
      _
    $region13: #{model_wrapper_forward.1} parent=1 // pred_fallthru
      _
    // Predicated region
    $region14: #{model_wrapper_forward.1} parent=1 // pred_check
      _
    $region15: #{model_wrapper_forward.1} parent=1 // pred_check_branch
      %29 = sbr.rel (0) target = $region17
    $region16: #{model_wrapper_forward.1} parent=1 // pred_region
      _
    $region17: #{model_wrapper_forward.1} parent=1 // pred_fallthru
      _
    // Predicated region
    $region18: #{model_wrapper_forward.1} parent=1 // pred_check
      _
    $region19: #{model_wrapper_forward.1} parent=1 // pred_check_branch
      %31 = sbr.rel (0) target = $region21
    $region20: #{model_wrapper_forward.1} parent=1 // pred_region
      _
    $region21: #{model_wrapper_forward.1} parent=1 // pred_fallthru
      _
    // Predicated region
    $region22: #{model_wrapper_forward.1} parent=1 // pred_check
      _
    $region23: #{model_wrapper_forward.1} parent=1 // pred_check_branch
      %33 = sbr.rel (0) target = $region25
    $region24: #{model_wrapper_forward.1} parent=1 // pred_region
      %35 = dma.done [#allocation3], 16384
    $region25: #{model_wrapper_forward.1} parent=1 // pred_fallthru
      _
    %v36 = vld [vmem:[%s0] sm:$0xff]
    %v37 = vld [vmem:[%s0 + $0x8] sm:$0xff]
    %v38 = vld [vmem:[%s0 + $0x10] sm:$0xff]
    %v39 = vld [vmem:[%s0 + $0x18] sm:$0xff]
    %v40 = vld [vmem:[%s0 + $0x20] sm:$0xff]
    %v41 = vld [vmem:[%s0 + $0x28] sm:$0xff]
    %v42 = vld [vmem:[%s0 + $0x30] sm:$0xff]
    %v43 = vld [vmem:[%s0 + $0x38] sm:$0xff]
    %v44 = vpack.c.bf16 %v36, %v36
    %v45 = vpack.c.bf16 %v37, %v37
    %v46 = vpack.c.bf16 %v38, %v38
    %v47 = vpack.c.bf16 %v39, %v39
    %v48 = vpack.c.bf16 %v40, %v40
    %v49 = vpack.c.bf16 %v41, %v41
    %v50 = vpack.c.bf16 %v42, %v42
    %v51 = vpack.c.bf16 %v43, %v43
    %v52 = vld [vmem:[#allocation2] sm:$0xff]
    %v53 = vld [vmem:[#allocation2 + $0x8] sm:$0xff]
    %v54 = vld [vmem:[#allocation2 + $0x10] sm:$0xff]
    %v55 = vld [vmem:[#allocation2 + $0x18] sm:$0xff]
    %v56 = vld [vmem:[#allocation2 + $0x20] sm:$0xff]
    %v57 = vld [vmem:[#allocation2 + $0x28] sm:$0xff]
    %v58 = vld [vmem:[#allocation2 + $0x30] sm:$0xff]
    %v59 = vld [vmem:[#allocation2 + $0x38] sm:$0xff]
    %v60 = vld [vmem:[#allocation2 + $0x40] sm:$0xff]
    %v61 = vld [vmem:[#allocation2 + $0x48] sm:$0xff]
    %v62 = vld [vmem:[#allocation2 + $0x50] sm:$0xff]
    %v63 = vld [vmem:[#allocation2 + $0x58] sm:$0xff]
    %v64 = vld [vmem:[#allocation2 + $0x60] sm:$0xff]
    %v65 = vld [vmem:[#allocation2 + $0x68] sm:$0xff]
    %v66 = vld [vmem:[#allocation2 + $0x70] sm:$0xff]
    %v67 = vld [vmem:[#allocation2 + $0x78] sm:$0xff]
    %v68 = vld [vmem:[#allocation2 + $0x80] sm:$0xff]
    %v69 = vld [vmem:[#allocation2 + $0x88] sm:$0xff]
    %v70 = vld [vmem:[#allocation2 + $0x90] sm:$0xff]
    %v71 = vld [vmem:[#allocation2 + $0x98] sm:$0xff]
    %v72 = vld [vmem:[#allocation2 + $0xa0] sm:$0xff]
    %v73 = vld [vmem:[#allocation2 + $0xa8] sm:$0xff]
    %v74 = vld [vmem:[#allocation2 + $0xb0] sm:$0xff]
    %v75 = vld [vmem:[#allocation2 + $0xb8] sm:$0xff]
    %v76 = vld [vmem:[#allocation2 + $0xc0] sm:$0xff]
    %v77 = vld [vmem:[#allocation2 + $0xc8] sm:$0xff]
    %v78 = vld [vmem:[#allocation2 + $0xd0] sm:$0xff]
    %v79 = vld [vmem:[#allocation2 + $0xd8] sm:$0xff]
    %v80 = vld [vmem:[#allocation2 + $0xe0] sm:$0xff]
    %v81 = vld [vmem:[#allocation2 + $0xe8] sm:$0xff]
    %v82 = vld [vmem:[#allocation2 + $0xf0] sm:$0xff]
    %v83 = vld [vmem:[#allocation2 + $0xf8] sm:$0xff]
    %v84 = vld [vmem:[#allocation2 + $0x100] sm:$0xff]
    %v85 = vld [vmem:[#allocation2 + $0x108] sm:$0xff]
    %v86 = vld [vmem:[#allocation2 + $0x110] sm:$0xff]
    %v87 = vld [vmem:[#allocation2 + $0x118] sm:$0xff]
    %v88 = vld [vmem:[#allocation2 + $0x120] sm:$0xff]
    %v89 = vld [vmem:[#allocation2 + $0x128] sm:$0xff]
    %v90 = vld [vmem:[#allocation2 + $0x130] sm:$0xff]
    %v91 = vld [vmem:[#allocation2 + $0x138] sm:$0xff]
    %v92 = vld [vmem:[#allocation2 + $0x140] sm:$0xff]
    %v93 = vld [vmem:[#allocation2 + $0x148] sm:$0xff]
    %v94 = vld [vmem:[#allocation2 + $0x150] sm:$0xff]
    %v95 = vld [vmem:[#allocation2 + $0x158] sm:$0xff]
    %v96 = vld [vmem:[#allocation2 + $0x160] sm:$0xff]
    %v97 = vld [vmem:[#allocation2 + $0x168] sm:$0xff]
    %v98 = vld [vmem:[#allocation2 + $0x170] sm:$0xff]
    %v99 = vld [vmem:[#allocation2 + $0x178] sm:$0xff]
    %v100 = vld [vmem:[#allocation2 + $0x180] sm:$0xff]
    %v101 = vld [vmem:[#allocation2 + $0x188] sm:$0xff]
    %v102 = vld [vmem:[#allocation2 + $0x190] sm:$0xff]
    %v103 = vld [vmem:[#allocation2 + $0x198] sm:$0xff]
    %v104 = vld [vmem:[#allocation2 + $0x1a0] sm:$0xff]
    %v105 = vld [vmem:[#allocation2 + $0x1a8] sm:$0xff]
    %v106 = vld [vmem:[#allocation2 + $0x1b0] sm:$0xff]
    %v107 = vld [vmem:[#allocation2 + $0x1b8] sm:$0xff]
    %v108 = vld [vmem:[#allocation2 + $0x1c0] sm:$0xff]
    %v109 = vld [vmem:[#allocation2 + $0x1c8] sm:$0xff]
    %v110 = vld [vmem:[#allocation2 + $0x1d0] sm:$0xff]
    %v111 = vld [vmem:[#allocation2 + $0x1d8] sm:$0xff]
    %v112 = vld [vmem:[#allocation2 + $0x1e0] sm:$0xff]
    %v113 = vld [vmem:[#allocation2 + $0x1e8] sm:$0xff]
    %v114 = vld [vmem:[#allocation2 + $0x1f0] sm:$0xff]
    %v115 = vld [vmem:[#allocation2 + $0x1f8] sm:$0xff]
    %v116 = vld [vmem:[#allocation2 + $0x200] sm:$0xff]
    %v117 = vld [vmem:[#allocation2 + $0x208] sm:$0xff]
    %v118 = vld [vmem:[#allocation2 + $0x210] sm:$0xff]
    %v119 = vld [vmem:[#allocation2 + $0x218] sm:$0xff]
    %v120 = vld [vmem:[#allocation2 + $0x220] sm:$0xff]
    %v121 = vld [vmem:[#allocation2 + $0x228] sm:$0xff]
    %v122 = vld [vmem:[#allocation2 + $0x230] sm:$0xff]
    %v123 = vld [vmem:[#allocation2 + $0x238] sm:$0xff]
    %v124 = vld [vmem:[#allocation2 + $0x240] sm:$0xff]
    %v125 = vld [vmem:[#allocation2 + $0x248] sm:$0xff]
    %v126 = vld [vmem:[#allocation2 + $0x250] sm:$0xff]
    %v127 = vld [vmem:[#allocation2 + $0x258] sm:$0xff]
    %v128 = vld [vmem:[#allocation2 + $0x260] sm:$0xff]
    %v129 = vld [vmem:[#allocation2 + $0x268] sm:$0xff]
    %v130 = vld [vmem:[#allocation2 + $0x270] sm:$0xff]
    %v131 = vld [vmem:[#allocation2 + $0x278] sm:$0xff]
    %v132 = vld [vmem:[#allocation2 + $0x280] sm:$0xff]
    %v133 = vld [vmem:[#allocation2 + $0x288] sm:$0xff]
    %v134 = vld [vmem:[#allocation2 + $0x290] sm:$0xff]
    %v135 = vld [vmem:[#allocation2 + $0x298] sm:$0xff]
    %v136 = vld [vmem:[#allocation2 + $0x2a0] sm:$0xff]
    %v137 = vld [vmem:[#allocation2 + $0x2a8] sm:$0xff]
    %v138 = vld [vmem:[#allocation2 + $0x2b0] sm:$0xff]
    %v139 = vld [vmem:[#allocation2 + $0x2b8] sm:$0xff]
    %v140 = vld [vmem:[#allocation2 + $0x2c0] sm:$0xff]
    %v141 = vld [vmem:[#allocation2 + $0x2c8] sm:$0xff]
    %v142 = vld [vmem:[#allocation2 + $0x2d0] sm:$0xff]
    %v143 = vld [vmem:[#allocation2 + $0x2d8] sm:$0xff]
    %v144 = vld [vmem:[#allocation2 + $0x2e0] sm:$0xff]
    %v145 = vld [vmem:[#allocation2 + $0x2e8] sm:$0xff]
    %v146 = vld [vmem:[#allocation2 + $0x2f0] sm:$0xff]
    %v147 = vld [vmem:[#allocation2 + $0x2f8] sm:$0xff]
    %v148 = vld [vmem:[#allocation2 + $0x300] sm:$0xff]
    %v149 = vld [vmem:[#allocation2 + $0x308] sm:$0xff]
    %v150 = vld [vmem:[#allocation2 + $0x310] sm:$0xff]
    %v151 = vld [vmem:[#allocation2 + $0x318] sm:$0xff]
    %v152 = vld [vmem:[#allocation2 + $0x320] sm:$0xff]
    %v153 = vld [vmem:[#allocation2 + $0x328] sm:$0xff]
    %v154 = vld [vmem:[#allocation2 + $0x330] sm:$0xff]
    %v155 = vld [vmem:[#allocation2 + $0x338] sm:$0xff]
    %v156 = vld [vmem:[#allocation2 + $0x340] sm:$0xff]
    %v157 = vld [vmem:[#allocation2 + $0x348] sm:$0xff]
    %v158 = vld [vmem:[#allocation2 + $0x350] sm:$0xff]
    %v159 = vld [vmem:[#allocation2 + $0x358] sm:$0xff]
    %v160 = vld [vmem:[#allocation2 + $0x360] sm:$0xff]
    %v161 = vld [vmem:[#allocation2 + $0x368] sm:$0xff]
    %v162 = vld [vmem:[#allocation2 + $0x370] sm:$0xff]
    %v163 = vld [vmem:[#allocation2 + $0x378] sm:$0xff]
    %v164 = vld [vmem:[#allocation2 + $0x380] sm:$0xff]
    %v165 = vld [vmem:[#allocation2 + $0x388] sm:$0xff]
    %v166 = vld [vmem:[#allocation2 + $0x390] sm:$0xff]
    %v167 = vld [vmem:[#allocation2 + $0x398] sm:$0xff]
    %v168 = vld [vmem:[#allocation2 + $0x3a0] sm:$0xff]
    %v169 = vld [vmem:[#allocation2 + $0x3a8] sm:$0xff]
    %v170 = vld [vmem:[#allocation2 + $0x3b0] sm:$0xff]
    %v171 = vld [vmem:[#allocation2 + $0x3b8] sm:$0xff]
    %v172 = vld [vmem:[#allocation2 + $0x3c0] sm:$0xff]
    %v173 = vld [vmem:[#allocation2 + $0x3c8] sm:$0xff]
    %v174 = vld [vmem:[#allocation2 + $0x3d0] sm:$0xff]
    %v175 = vld [vmem:[#allocation2 + $0x3d8] sm:$0xff]
    %v176 = vld [vmem:[#allocation2 + $0x3e0] sm:$0xff]
    %v177 = vld [vmem:[#allocation2 + $0x3e8] sm:$0xff]
    %v178 = vld [vmem:[#allocation2 + $0x3f0] sm:$0xff]
    %v179 = vld [vmem:[#allocation2 + $0x3f8] sm:$0xff]
    %v180 = vld [vmem:[%s2] sm:$0x3]
    %v182 = vperm.slane %v180, 0
    %v183 = vperm.slane %v180, 1
    %v314 = vunpack.c.l.b16 %v52
    %v315 = vunpack.c.h.b16 %v52
    %v316 = vunpack.c.l.b16 %v53
    %v317 = vunpack.c.h.b16 %v53
    %v318 = vunpack.c.l.b16 %v54
    %v319 = vunpack.c.h.b16 %v54
    %v320 = vunpack.c.l.b16 %v55
    %v321 = vunpack.c.h.b16 %v55
    %v322 = vunpack.c.l.b16 %v56
    %v323 = vunpack.c.h.b16 %v56
    %v324 = vunpack.c.l.b16 %v57
    %v325 = vunpack.c.h.b16 %v57
    %v326 = vunpack.c.l.b16 %v58
    %v327 = vunpack.c.h.b16 %v58
    %v328 = vunpack.c.l.b16 %v59
    %v329 = vunpack.c.h.b16 %v59
    %v330 = vunpack.c.l.b16 %v60
    %v331 = vunpack.c.h.b16 %v60
    %v332 = vunpack.c.l.b16 %v61
    %v333 = vunpack.c.h.b16 %v61
    %v334 = vunpack.c.l.b16 %v62
    %v335 = vunpack.c.h.b16 %v62
    %v336 = vunpack.c.l.b16 %v63
    %v337 = vunpack.c.h.b16 %v63
    %v338 = vunpack.c.l.b16 %v64
    %v339 = vunpack.c.h.b16 %v64
    %v340 = vunpack.c.l.b16 %v65
    %v341 = vunpack.c.h.b16 %v65
    %v342 = vunpack.c.l.b16 %v66
    %v343 = vunpack.c.h.b16 %v66
    %v344 = vunpack.c.l.b16 %v67
    %v345 = vunpack.c.h.b16 %v67
    %v346 = vunpack.c.l.b16 %v68
    %v347 = vunpack.c.h.b16 %v68
    %v348 = vunpack.c.l.b16 %v69
    %v349 = vunpack.c.h.b16 %v69
    %v350 = vunpack.c.l.b16 %v70
    %v351 = vunpack.c.h.b16 %v70
    %v352 = vunpack.c.l.b16 %v71
    %v353 = vunpack.c.h.b16 %v71
    %v354 = vunpack.c.l.b16 %v72
    %v355 = vunpack.c.h.b16 %v72
    %v356 = vunpack.c.l.b16 %v73
    %v357 = vunpack.c.h.b16 %v73
    %v358 = vunpack.c.l.b16 %v74
    %v359 = vunpack.c.h.b16 %v74
    %v360 = vunpack.c.l.b16 %v75
    %v361 = vunpack.c.h.b16 %v75
    %v362 = vunpack.c.l.b16 %v76
    %v363 = vunpack.c.h.b16 %v76
    %v364 = vunpack.c.l.b16 %v77
    %v365 = vunpack.c.h.b16 %v77
    %v366 = vunpack.c.l.b16 %v78
    %v367 = vunpack.c.h.b16 %v78
    %v368 = vunpack.c.l.b16 %v79
    %v369 = vunpack.c.h.b16 %v79
    %v370 = vunpack.c.l.b16 %v80
    %v371 = vunpack.c.h.b16 %v80
    %v372 = vunpack.c.l.b16 %v81
    %v373 = vunpack.c.h.b16 %v81
    %v374 = vunpack.c.l.b16 %v82
    %v375 = vunpack.c.h.b16 %v82
    %v376 = vunpack.c.l.b16 %v83
    %v377 = vunpack.c.h.b16 %v83
    %v378 = vunpack.c.l.b16 %v84
    %v379 = vunpack.c.h.b16 %v84
    %v380 = vunpack.c.l.b16 %v85
    %v381 = vunpack.c.h.b16 %v85
    %v382 = vunpack.c.l.b16 %v86
    %v383 = vunpack.c.h.b16 %v86
    %v384 = vunpack.c.l.b16 %v87
    %v385 = vunpack.c.h.b16 %v87
    %v386 = vunpack.c.l.b16 %v88
    %v387 = vunpack.c.h.b16 %v88
    %v388 = vunpack.c.l.b16 %v89
    %v389 = vunpack.c.h.b16 %v89
    %v390 = vunpack.c.l.b16 %v90
    %v391 = vunpack.c.h.b16 %v90
    %v392 = vunpack.c.l.b16 %v91
    %v393 = vunpack.c.h.b16 %v91
    %v394 = vunpack.c.l.b16 %v92
    %v395 = vunpack.c.h.b16 %v92
    %v396 = vunpack.c.l.b16 %v93
    %v397 = vunpack.c.h.b16 %v93
    %v398 = vunpack.c.l.b16 %v94
    %v399 = vunpack.c.h.b16 %v94
    %v400 = vunpack.c.l.b16 %v95
    %v401 = vunpack.c.h.b16 %v95
    %v402 = vunpack.c.l.b16 %v96
    %v403 = vunpack.c.h.b16 %v96
    %v404 = vunpack.c.l.b16 %v97
    %v405 = vunpack.c.h.b16 %v97
    %v406 = vunpack.c.l.b16 %v98
    %v407 = vunpack.c.h.b16 %v98
    %v408 = vunpack.c.l.b16 %v99
    %v409 = vunpack.c.h.b16 %v99
    %v410 = vunpack.c.l.b16 %v100
    %v411 = vunpack.c.h.b16 %v100
    %v412 = vunpack.c.l.b16 %v101
    %v413 = vunpack.c.h.b16 %v101
    %v414 = vunpack.c.l.b16 %v102
    %v415 = vunpack.c.h.b16 %v102
    %v416 = vunpack.c.l.b16 %v103
    %v417 = vunpack.c.h.b16 %v103
    %v418 = vunpack.c.l.b16 %v104
    %v419 = vunpack.c.h.b16 %v104
    %v420 = vunpack.c.l.b16 %v105
    %v421 = vunpack.c.h.b16 %v105
    %v422 = vunpack.c.l.b16 %v106
    %v423 = vunpack.c.h.b16 %v106
    %v424 = vunpack.c.l.b16 %v107
    %v425 = vunpack.c.h.b16 %v107
    %v426 = vunpack.c.l.b16 %v108
    %v427 = vunpack.c.h.b16 %v108
    %v428 = vunpack.c.l.b16 %v109
    %v429 = vunpack.c.h.b16 %v109
    %v430 = vunpack.c.l.b16 %v110
    %v431 = vunpack.c.h.b16 %v110
    %v432 = vunpack.c.l.b16 %v111
    %v433 = vunpack.c.h.b16 %v111
    %v434 = vunpack.c.l.b16 %v112
    %v435 = vunpack.c.h.b16 %v112
    %v436 = vunpack.c.l.b16 %v113
    %v437 = vunpack.c.h.b16 %v113
    %v438 = vunpack.c.l.b16 %v114
    %v439 = vunpack.c.h.b16 %v114
    %v440 = vunpack.c.l.b16 %v115
    %v441 = vunpack.c.h.b16 %v115
    %v442 = vunpack.c.l.b16 %v116
    %v443 = vunpack.c.h.b16 %v116
    %v444 = vunpack.c.l.b16 %v117
    %v445 = vunpack.c.h.b16 %v117
    %v446 = vunpack.c.l.b16 %v118
    %v447 = vunpack.c.h.b16 %v118
    %v448 = vunpack.c.l.b16 %v119
    %v449 = vunpack.c.h.b16 %v119
    %v450 = vunpack.c.l.b16 %v120
    %v451 = vunpack.c.h.b16 %v120
    %v452 = vunpack.c.l.b16 %v121
    %v453 = vunpack.c.h.b16 %v121
    %v454 = vunpack.c.l.b16 %v122
    %v455 = vunpack.c.h.b16 %v122
    %v456 = vunpack.c.l.b16 %v123
    %v457 = vunpack.c.h.b16 %v123
    %v458 = vunpack.c.l.b16 %v124
    %v459 = vunpack.c.h.b16 %v124
    %v460 = vunpack.c.l.b16 %v125
    %v461 = vunpack.c.h.b16 %v125
    %v462 = vunpack.c.l.b16 %v126
    %v463 = vunpack.c.h.b16 %v126
    %v464 = vunpack.c.l.b16 %v127
    %v465 = vunpack.c.h.b16 %v127
    %v466 = vunpack.c.l.b16 %v128
    %v467 = vunpack.c.h.b16 %v128
    %v468 = vunpack.c.l.b16 %v129
    %v469 = vunpack.c.h.b16 %v129
    %v470 = vunpack.c.l.b16 %v130
    %v471 = vunpack.c.h.b16 %v130
    %v472 = vunpack.c.l.b16 %v131
    %v473 = vunpack.c.h.b16 %v131
    %v474 = vunpack.c.l.b16 %v132
    %v475 = vunpack.c.h.b16 %v132
    %v476 = vunpack.c.l.b16 %v133
    %v477 = vunpack.c.h.b16 %v133
    %v478 = vunpack.c.l.b16 %v134
    %v479 = vunpack.c.h.b16 %v134
    %v480 = vunpack.c.l.b16 %v135
    %v481 = vunpack.c.h.b16 %v135
    %v482 = vunpack.c.l.b16 %v136
    %v483 = vunpack.c.h.b16 %v136
    %v484 = vunpack.c.l.b16 %v137
    %v485 = vunpack.c.h.b16 %v137
    %v486 = vunpack.c.l.b16 %v138
    %v487 = vunpack.c.h.b16 %v138
    %v488 = vunpack.c.l.b16 %v139
    %v489 = vunpack.c.h.b16 %v139
    %v490 = vunpack.c.l.b16 %v140
    %v491 = vunpack.c.h.b16 %v140
    %v492 = vunpack.c.l.b16 %v141
    %v493 = vunpack.c.h.b16 %v141
    %v494 = vunpack.c.l.b16 %v142
    %v495 = vunpack.c.h.b16 %v142
    %v496 = vunpack.c.l.b16 %v143
    %v497 = vunpack.c.h.b16 %v143
    %v498 = vunpack.c.l.b16 %v144
    %v499 = vunpack.c.h.b16 %v144
    %v500 = vunpack.c.l.b16 %v145
    %v501 = vunpack.c.h.b16 %v145
    %v502 = vunpack.c.l.b16 %v146
    %v503 = vunpack.c.h.b16 %v146
    %v504 = vunpack.c.l.b16 %v147
    %v505 = vunpack.c.h.b16 %v147
    %v506 = vunpack.c.l.b16 %v148
    %v507 = vunpack.c.h.b16 %v148
    %v508 = vunpack.c.l.b16 %v149
    %v509 = vunpack.c.h.b16 %v149
    %v510 = vunpack.c.l.b16 %v150
    %v511 = vunpack.c.h.b16 %v150
    %v512 = vunpack.c.l.b16 %v151
    %v513 = vunpack.c.h.b16 %v151
    %v514 = vunpack.c.l.b16 %v152
    %v515 = vunpack.c.h.b16 %v152
    %v516 = vunpack.c.l.b16 %v153
    %v517 = vunpack.c.h.b16 %v153
    %v518 = vunpack.c.l.b16 %v154
    %v519 = vunpack.c.h.b16 %v154
    %v520 = vunpack.c.l.b16 %v155
    %v521 = vunpack.c.h.b16 %v155
    %v522 = vunpack.c.l.b16 %v156
    %v523 = vunpack.c.h.b16 %v156
    %v524 = vunpack.c.l.b16 %v157
    %v525 = vunpack.c.h.b16 %v157
    %v526 = vunpack.c.l.b16 %v158
    %v527 = vunpack.c.h.b16 %v158
    %v528 = vunpack.c.l.b16 %v159
    %v529 = vunpack.c.h.b16 %v159
    %v530 = vunpack.c.l.b16 %v160
    %v531 = vunpack.c.h.b16 %v160
    %v532 = vunpack.c.l.b16 %v161
    %v533 = vunpack.c.h.b16 %v161
    %v534 = vunpack.c.l.b16 %v162
    %v535 = vunpack.c.h.b16 %v162
    %v536 = vunpack.c.l.b16 %v163
    %v537 = vunpack.c.h.b16 %v163
    %v538 = vunpack.c.l.b16 %v164
    %v539 = vunpack.c.h.b16 %v164
    %v540 = vunpack.c.l.b16 %v165
    %v541 = vunpack.c.h.b16 %v165
    %v542 = vunpack.c.l.b16 %v166
    %v543 = vunpack.c.h.b16 %v166
    %v544 = vunpack.c.l.b16 %v167
    %v545 = vunpack.c.h.b16 %v167
    %v546 = vunpack.c.l.b16 %v168
    %v547 = vunpack.c.h.b16 %v168
    %v548 = vunpack.c.l.b16 %v169
    %v549 = vunpack.c.h.b16 %v169
    %v550 = vunpack.c.l.b16 %v170
    %v551 = vunpack.c.h.b16 %v170
    %v552 = vunpack.c.l.b16 %v171
    %v553 = vunpack.c.h.b16 %v171
    %v554 = vunpack.c.l.b16 %v172
    %v555 = vunpack.c.h.b16 %v172
    %v556 = vunpack.c.l.b16 %v173
    %v557 = vunpack.c.h.b16 %v173
    %v558 = vunpack.c.l.b16 %v174
    %v559 = vunpack.c.h.b16 %v174
    %v560 = vunpack.c.l.b16 %v175
    %v561 = vunpack.c.h.b16 %v175
    %v562 = vunpack.c.l.b16 %v176
    %v563 = vunpack.c.h.b16 %v176
    %v564 = vunpack.c.l.b16 %v177
    %v565 = vunpack.c.h.b16 %v177
    %v566 = vunpack.c.l.b16 %v178
    %v567 = vunpack.c.h.b16 %v178
    %v568 = vunpack.c.l.b16 %v179
    %v569 = vunpack.c.h.b16 %v179
    %v570 = vpack.c.b16 %v316, %v314
    %v571 = vpack.c.b16 %v317, %v315
    %v572 = vpack.c.b16 %v320, %v318
    %v573 = vpack.c.b16 %v321, %v319
    %v574 = vpack.c.b16 %v324, %v322
    %v575 = vpack.c.b16 %v325, %v323
    %v576 = vpack.c.b16 %v328, %v326
    %v577 = vpack.c.b16 %v329, %v327
    %v578 = vpack.c.b16 %v332, %v330
    %v579 = vpack.c.b16 %v333, %v331
    %v580 = vpack.c.b16 %v336, %v334
    %v581 = vpack.c.b16 %v337, %v335
    %v582 = vpack.c.b16 %v340, %v338
    %v583 = vpack.c.b16 %v341, %v339
    %v584 = vpack.c.b16 %v344, %v342
    %v585 = vpack.c.b16 %v345, %v343
    %v586 = vpack.c.b16 %v348, %v346
    %v587 = vpack.c.b16 %v349, %v347
    %v588 = vpack.c.b16 %v352, %v350
    %v589 = vpack.c.b16 %v353, %v351
    %v590 = vpack.c.b16 %v356, %v354
    %v591 = vpack.c.b16 %v357, %v355
    %v592 = vpack.c.b16 %v360, %v358
    %v593 = vpack.c.b16 %v361, %v359
    %v594 = vpack.c.b16 %v364, %v362
    %v595 = vpack.c.b16 %v365, %v363
    %v596 = vpack.c.b16 %v368, %v366
    %v597 = vpack.c.b16 %v369, %v367
    %v598 = vpack.c.b16 %v372, %v370
    %v599 = vpack.c.b16 %v373, %v371
    %v600 = vpack.c.b16 %v376, %v374
    %v601 = vpack.c.b16 %v377, %v375
    %v602 = vpack.c.b16 %v380, %v378
    %v603 = vpack.c.b16 %v381, %v379
    %v604 = vpack.c.b16 %v384, %v382
    %v605 = vpack.c.b16 %v385, %v383
    %v606 = vpack.c.b16 %v388, %v386
    %v607 = vpack.c.b16 %v389, %v387
    %v608 = vpack.c.b16 %v392, %v390
    %v609 = vpack.c.b16 %v393, %v391
    %v610 = vpack.c.b16 %v396, %v394
    %v611 = vpack.c.b16 %v397, %v395
    %v612 = vpack.c.b16 %v400, %v398
    %v613 = vpack.c.b16 %v401, %v399
    %v614 = vpack.c.b16 %v404, %v402
    %v615 = vpack.c.b16 %v405, %v403
    %v616 = vpack.c.b16 %v408, %v406
    %v617 = vpack.c.b16 %v409, %v407
    %v618 = vpack.c.b16 %v412, %v410
    %v619 = vpack.c.b16 %v413, %v411
    %v620 = vpack.c.b16 %v416, %v414
    %v621 = vpack.c.b16 %v417, %v415
    %v622 = vpack.c.b16 %v420, %v418
    %v623 = vpack.c.b16 %v421, %v419
    %v624 = vpack.c.b16 %v424, %v422
    %v625 = vpack.c.b16 %v425, %v423
    %v626 = vpack.c.b16 %v428, %v426
    %v627 = vpack.c.b16 %v429, %v427
    %v628 = vpack.c.b16 %v432, %v430
    %v629 = vpack.c.b16 %v433, %v431
    %v630 = vpack.c.b16 %v436, %v434
    %v631 = vpack.c.b16 %v437, %v435
    %v632 = vpack.c.b16 %v440, %v438
    %v633 = vpack.c.b16 %v441, %v439
    %v634 = vpack.c.b16 %v444, %v442
    %v635 = vpack.c.b16 %v445, %v443
    %v636 = vpack.c.b16 %v448, %v446
    %v637 = vpack.c.b16 %v449, %v447
    %v638 = vpack.c.b16 %v452, %v450
    %v639 = vpack.c.b16 %v453, %v451
    %v640 = vpack.c.b16 %v456, %v454
    %v641 = vpack.c.b16 %v457, %v455
    %v642 = vpack.c.b16 %v460, %v458
    %v643 = vpack.c.b16 %v461, %v459
    %v644 = vpack.c.b16 %v464, %v462
    %v645 = vpack.c.b16 %v465, %v463
    %v646 = vpack.c.b16 %v468, %v466
    %v647 = vpack.c.b16 %v469, %v467
    %v648 = vpack.c.b16 %v472, %v470
    %v649 = vpack.c.b16 %v473, %v471
    %v650 = vpack.c.b16 %v476, %v474
    %v651 = vpack.c.b16 %v477, %v475
    %v652 = vpack.c.b16 %v480, %v478
    %v653 = vpack.c.b16 %v481, %v479
    %v654 = vpack.c.b16 %v484, %v482
    %v655 = vpack.c.b16 %v485, %v483
    %v656 = vpack.c.b16 %v488, %v486
    %v657 = vpack.c.b16 %v489, %v487
    %v658 = vpack.c.b16 %v492, %v490
    %v659 = vpack.c.b16 %v493, %v491
    %v660 = vpack.c.b16 %v496, %v494
    %v661 = vpack.c.b16 %v497, %v495
    %v662 = vpack.c.b16 %v500, %v498
    %v663 = vpack.c.b16 %v501, %v499
    %v664 = vpack.c.b16 %v504, %v502
    %v665 = vpack.c.b16 %v505, %v503
    %v666 = vpack.c.b16 %v508, %v506
    %v667 = vpack.c.b16 %v509, %v507
    %v668 = vpack.c.b16 %v512, %v510
    %v669 = vpack.c.b16 %v513, %v511
    %v670 = vpack.c.b16 %v516, %v514
    %v671 = vpack.c.b16 %v517, %v515
    %v672 = vpack.c.b16 %v520, %v518
    %v673 = vpack.c.b16 %v521, %v519
    %v674 = vpack.c.b16 %v524, %v522
    %v675 = vpack.c.b16 %v525, %v523
    %v676 = vpack.c.b16 %v528, %v526
    %v677 = vpack.c.b16 %v529, %v527
    %v678 = vpack.c.b16 %v532, %v530
    %v679 = vpack.c.b16 %v533, %v531
    %v680 = vpack.c.b16 %v536, %v534
    %v681 = vpack.c.b16 %v537, %v535
    %v682 = vpack.c.b16 %v540, %v538
    %v683 = vpack.c.b16 %v541, %v539
    %v684 = vpack.c.b16 %v544, %v542
    %v685 = vpack.c.b16 %v545, %v543
    %v686 = vpack.c.b16 %v548, %v546
    %v687 = vpack.c.b16 %v549, %v547
    %v688 = vpack.c.b16 %v552, %v550
    %v689 = vpack.c.b16 %v553, %v551
    %v690 = vpack.c.b16 %v556, %v554
    %v691 = vpack.c.b16 %v557, %v555
    %v692 = vpack.c.b16 %v560, %v558
    %v693 = vpack.c.b16 %v561, %v559
    %v694 = vpack.c.b16 %v564, %v562
    %v695 = vpack.c.b16 %v565, %v563
    %v696 = vpack.c.b16 %v568, %v566
    %v697 = vpack.c.b16 %v569, %v567
    %826 = vmatpush.bf16.msra.mxu0 %v584
    %827 = vmatpush.bf16.msra.mxu0 %v582
    %828 = vmatpush.bf16.msra.mxu0 %v580
    %829 = vmatpush.bf16.msra.mxu0 %v578
    %830 = vmatpush.bf16.msra.mxu0 %v576
    %831 = vmatpush.bf16.msra.mxu0 %v574
    %832 = vmatpush.bf16.msra.mxu0 %v572
    %833 = vmatpush.bf16.msra.mxu0 %v570
    %834 = vmatmul.bf16.gmra.mxu0 %v44
    %v835 = vpop.f32.mrf.mxu0
    %v836 = vadd.f32 %v182, %v835
    %v837 = vpop.f32.mrf.mxu0
    %838 = vdwg.mxu0
    %839 = vmatpush.bf16.msra.mxu0 %v600
    %840 = vmatpush.bf16.msra.mxu0 %v598
    %841 = vmatpush.bf16.msra.mxu0 %v596
    %842 = vmatpush.bf16.msra.mxu0 %v594
    %843 = vmatpush.bf16.msra.mxu0 %v592
    %844 = vmatpush.bf16.msra.mxu0 %v590
    %845 = vmatpush.bf16.msra.mxu0 %v588
    %846 = vmatpush.bf16.msra.mxu0 %v586
    %847 = vmatmul.bf16.gmra.mxu0 %v45
    %v848 = vpop.f32.mrf.mxu0
    %v849 = vadd.f32 %v836, %v848
    %v850 = vpop.f32.mrf.mxu0
    %851 = vdwg.mxu0
    %852 = vmatpush.bf16.msra.mxu0 %v616
    %853 = vmatpush.bf16.msra.mxu0 %v614
    %854 = vmatpush.bf16.msra.mxu0 %v612
    %855 = vmatpush.bf16.msra.mxu0 %v610
    %856 = vmatpush.bf16.msra.mxu0 %v608
    %857 = vmatpush.bf16.msra.mxu0 %v606
    %858 = vmatpush.bf16.msra.mxu0 %v604
    %859 = vmatpush.bf16.msra.mxu0 %v602
    %860 = vmatmul.bf16.gmra.mxu0 %v46
    %v861 = vpop.f32.mrf.mxu0
    %v862 = vadd.f32 %v849, %v861
    %v863 = vpop.f32.mrf.mxu0
    %864 = vdwg.mxu0
    %865 = vmatpush.bf16.msra.mxu0 %v632
    %866 = vmatpush.bf16.msra.mxu0 %v630
    %867 = vmatpush.bf16.msra.mxu0 %v628
    %868 = vmatpush.bf16.msra.mxu0 %v626
    %869 = vmatpush.bf16.msra.mxu0 %v624
    %870 = vmatpush.bf16.msra.mxu0 %v622
    %871 = vmatpush.bf16.msra.mxu0 %v620
    %872 = vmatpush.bf16.msra.mxu0 %v618
    %873 = vmatmul.bf16.gmra.mxu0 %v47
    %v874 = vpop.f32.mrf.mxu0
    %v875 = vadd.f32 %v862, %v874
    %v876 = vpop.f32.mrf.mxu0
    %877 = vdwg.mxu0
    %878 = vmatpush.bf16.msra.mxu0 %v648
    %879 = vmatpush.bf16.msra.mxu0 %v646
    %880 = vmatpush.bf16.msra.mxu0 %v644
    %881 = vmatpush.bf16.msra.mxu0 %v642
    %882 = vmatpush.bf16.msra.mxu0 %v640
    %883 = vmatpush.bf16.msra.mxu0 %v638
    %884 = vmatpush.bf16.msra.mxu0 %v636
    %885 = vmatpush.bf16.msra.mxu0 %v634
    %886 = vmatmul.bf16.gmra.mxu0 %v48
    %v887 = vpop.f32.mrf.mxu0
    %v888 = vadd.f32 %v875, %v887
    %v889 = vpop.f32.mrf.mxu0
    %890 = vdwg.mxu0
    %891 = vmatpush.bf16.msra.mxu0 %v664
    %892 = vmatpush.bf16.msra.mxu0 %v662
    %893 = vmatpush.bf16.msra.mxu0 %v660
    %894 = vmatpush.bf16.msra.mxu0 %v658
    %895 = vmatpush.bf16.msra.mxu0 %v656
    %896 = vmatpush.bf16.msra.mxu0 %v654
    %897 = vmatpush.bf16.msra.mxu0 %v652
    %898 = vmatpush.bf16.msra.mxu0 %v650
    %899 = vmatmul.bf16.gmra.mxu0 %v49
    %v900 = vpop.f32.mrf.mxu0
    %v901 = vadd.f32 %v888, %v900
    %v902 = vpop.f32.mrf.mxu0
    %903 = vdwg.mxu0
    %904 = vmatpush.bf16.msra.mxu0 %v680
    %905 = vmatpush.bf16.msra.mxu0 %v678
    %906 = vmatpush.bf16.msra.mxu0 %v676
    %907 = vmatpush.bf16.msra.mxu0 %v674
    %908 = vmatpush.bf16.msra.mxu0 %v672
    %909 = vmatpush.bf16.msra.mxu0 %v670
    %910 = vmatpush.bf16.msra.mxu0 %v668
    %911 = vmatpush.bf16.msra.mxu0 %v666
    %912 = vmatmul.bf16.gmra.mxu0 %v50
    %v913 = vpop.f32.mrf.mxu0
    %v914 = vadd.f32 %v901, %v913
    %v915 = vpop.f32.mrf.mxu0
    %916 = vdwg.mxu0
    %917 = vmatpush.bf16.msra.mxu0 %v696
    %918 = vmatpush.bf16.msra.mxu0 %v694
    %919 = vmatpush.bf16.msra.mxu0 %v692
    %920 = vmatpush.bf16.msra.mxu0 %v690
    %921 = vmatpush.bf16.msra.mxu0 %v688
    %922 = vmatpush.bf16.msra.mxu0 %v686
    %923 = vmatpush.bf16.msra.mxu0 %v684
    %924 = vmatpush.bf16.msra.mxu0 %v682
    %925 = vmatmul.bf16.gmra.mxu0 %v51
    %v926 = vpop.f32.mrf.mxu0
    %v927 = vadd.f32 %v914, %v926
    %v928 = vpop.f32.mrf.mxu0
    %929 = vdwg.mxu0
    %930 = vmatpush.bf16.msra.mxu0 %v585
    %931 = vmatpush.bf16.msra.mxu0 %v583
    %932 = vmatpush.bf16.msra.mxu0 %v581
    %933 = vmatpush.bf16.msra.mxu0 %v579
    %934 = vmatpush.bf16.msra.mxu0 %v577
    %935 = vmatpush.bf16.msra.mxu0 %v575
    %936 = vmatpush.bf16.msra.mxu0 %v573
    %937 = vmatpush.bf16.msra.mxu0 %v571
    %938 = vmatmul.bf16.gmra.mxu0 %v44
    %v939 = vpop.f32.mrf.mxu0
    %v940 = vadd.f32 %v183, %v939
    %v941 = vpop.f32.mrf.mxu0
    %942 = vdwg.mxu0
    %943 = vmatpush.bf16.msra.mxu0 %v601
    %944 = vmatpush.bf16.msra.mxu0 %v599
    %945 = vmatpush.bf16.msra.mxu0 %v597
    %946 = vmatpush.bf16.msra.mxu0 %v595
    %947 = vmatpush.bf16.msra.mxu0 %v593
    %948 = vmatpush.bf16.msra.mxu0 %v591
    %949 = vmatpush.bf16.msra.mxu0 %v589
    %950 = vmatpush.bf16.msra.mxu0 %v587
    %951 = vmatmul.bf16.gmra.mxu0 %v45
    %v952 = vpop.f32.mrf.mxu0
    %v953 = vadd.f32 %v940, %v952
    %v954 = vpop.f32.mrf.mxu0
    %955 = vdwg.mxu0
    %956 = vmatpush.bf16.msra.mxu0 %v617
    %957 = vmatpush.bf16.msra.mxu0 %v615
    %958 = vmatpush.bf16.msra.mxu0 %v613
    %959 = vmatpush.bf16.msra.mxu0 %v611
    %960 = vmatpush.bf16.msra.mxu0 %v609
    %961 = vmatpush.bf16.msra.mxu0 %v607
    %962 = vmatpush.bf16.msra.mxu0 %v605
    %963 = vmatpush.bf16.msra.mxu0 %v603
    %964 = vmatmul.bf16.gmra.mxu0 %v46
    %v965 = vpop.f32.mrf.mxu0
    %v966 = vadd.f32 %v953, %v965
    %v967 = vpop.f32.mrf.mxu0
    %968 = vdwg.mxu0
    %969 = vmatpush.bf16.msra.mxu0 %v633
    %970 = vmatpush.bf16.msra.mxu0 %v631
    %971 = vmatpush.bf16.msra.mxu0 %v629
    %972 = vmatpush.bf16.msra.mxu0 %v627
    %973 = vmatpush.bf16.msra.mxu0 %v625
    %974 = vmatpush.bf16.msra.mxu0 %v623
    %975 = vmatpush.bf16.msra.mxu0 %v621
    %976 = vmatpush.bf16.msra.mxu0 %v619
    %977 = vmatmul.bf16.gmra.mxu0 %v47
    %v978 = vpop.f32.mrf.mxu0
    %v979 = vadd.f32 %v966, %v978
    %v980 = vpop.f32.mrf.mxu0
    %981 = vdwg.mxu0
    %982 = vmatpush.bf16.msra.mxu0 %v649
    %983 = vmatpush.bf16.msra.mxu0 %v647
    %984 = vmatpush.bf16.msra.mxu0 %v645
    %985 = vmatpush.bf16.msra.mxu0 %v643
    %986 = vmatpush.bf16.msra.mxu0 %v641
    %987 = vmatpush.bf16.msra.mxu0 %v639
    %988 = vmatpush.bf16.msra.mxu0 %v637
    %989 = vmatpush.bf16.msra.mxu0 %v635
    %990 = vmatmul.bf16.gmra.mxu0 %v48
    %v991 = vpop.f32.mrf.mxu0
    %v992 = vadd.f32 %v979, %v991
    %v993 = vpop.f32.mrf.mxu0
    %994 = vdwg.mxu0
    %995 = vmatpush.bf16.msra.mxu0 %v665
    %996 = vmatpush.bf16.msra.mxu0 %v663
    %997 = vmatpush.bf16.msra.mxu0 %v661
    %998 = vmatpush.bf16.msra.mxu0 %v659
    %999 = vmatpush.bf16.msra.mxu0 %v657
    %1000 = vmatpush.bf16.msra.mxu0 %v655
    %1001 = vmatpush.bf16.msra.mxu0 %v653
    %1002 = vmatpush.bf16.msra.mxu0 %v651
    %1003 = vmatmul.bf16.gmra.mxu0 %v49
    %v1004 = vpop.f32.mrf.mxu0
    %v1005 = vadd.f32 %v992, %v1004
    %v1006 = vpop.f32.mrf.mxu0
    %1007 = vdwg.mxu0
    %1008 = vmatpush.bf16.msra.mxu0 %v681
    %1009 = vmatpush.bf16.msra.mxu0 %v679
    %1010 = vmatpush.bf16.msra.mxu0 %v677
    %1011 = vmatpush.bf16.msra.mxu0 %v675
    %1012 = vmatpush.bf16.msra.mxu0 %v673
    %1013 = vmatpush.bf16.msra.mxu0 %v671
    %1014 = vmatpush.bf16.msra.mxu0 %v669
    %1015 = vmatpush.bf16.msra.mxu0 %v667
    %1016 = vmatmul.bf16.gmra.mxu0 %v50
    %v1017 = vpop.f32.mrf.mxu0
    %v1018 = vadd.f32 %v1005, %v1017
    %v1019 = vpop.f32.mrf.mxu0
    %1020 = vdwg.mxu0
    %1021 = vmatpush.bf16.msra.mxu0 %v697
    %1022 = vmatpush.bf16.msra.mxu0 %v695
    %1023 = vmatpush.bf16.msra.mxu0 %v693
    %1024 = vmatpush.bf16.msra.mxu0 %v691
    %1025 = vmatpush.bf16.msra.mxu0 %v689
    %1026 = vmatpush.bf16.msra.mxu0 %v687
    %1027 = vmatpush.bf16.msra.mxu0 %v685
    %1028 = vmatpush.bf16.msra.mxu0 %v683
    %1029 = vmatmul.bf16.gmra.mxu0 %v51
    %v1030 = vpop.f32.mrf.mxu0
    %v1031 = vadd.f32 %v1018, %v1030
    %v1032 = vpop.f32.mrf.mxu0
    %1033 = vdwg.mxu0
    %v1034 = vmax.f32 %v927, 0.0
    %v1035 = vmax.f32 %v1031, 0.0
    %v1036 = vpack.c.bf16 %v1034, %v1034
    %v1037 = vpack.c.bf16 %v1035, %v1035
    %v1038 = vld [vmem:[%s3] sm:$0xf]
    %v1039 = vld [vmem:[%s3 + $0x4] sm:$0xf]
    %v1040 = vld [vmem:[%s3 + $0x8] sm:$0xf]
    %v1041 = vld [vmem:[%s3 + $0xc] sm:$0xf]
    %v1042 = vld [vmem:[%s3 + $0x10] sm:$0xf]
    %v1043 = vld [vmem:[%s3 + $0x14] sm:$0xf]
    %v1044 = vld [vmem:[%s3 + $0x18] sm:$0xf]
    %v1045 = vld [vmem:[%s3 + $0x1c] sm:$0xf]
    %v1046 = vld [vmem:[%s3 + $0x20] sm:$0xf]
    %v1047 = vld [vmem:[%s3 + $0x24] sm:$0xf]
    %v1048 = vld [vmem:[%s3 + $0x28] sm:$0xf]
    %v1049 = vld [vmem:[%s3 + $0x2c] sm:$0xf]
    %v1050 = vld [vmem:[%s3 + $0x30] sm:$0xf]
    %v1051 = vld [vmem:[%s3 + $0x34] sm:$0xf]
    %v1052 = vld [vmem:[%s3 + $0x38] sm:$0xf]
    %v1053 = vld [vmem:[%s3 + $0x3c] sm:$0xf]
    %v1054 = vld [vmem:[%s3 + $0x40] sm:$0xf]
    %v1055 = vld [vmem:[%s3 + $0x44] sm:$0xf]
    %v1056 = vld [vmem:[%s3 + $0x48] sm:$0xf]
    %v1057 = vld [vmem:[%s3 + $0x4c] sm:$0xf]
    %v1058 = vld [vmem:[%s3 + $0x50] sm:$0xf]
    %v1059 = vld [vmem:[%s3 + $0x54] sm:$0xf]
    %v1060 = vld [vmem:[%s3 + $0x58] sm:$0xf]
    %v1061 = vld [vmem:[%s3 + $0x5c] sm:$0xf]
    %v1062 = vld [vmem:[%s3 + $0x60] sm:$0xf]
    %v1063 = vld [vmem:[%s3 + $0x64] sm:$0xf]
    %v1064 = vld [vmem:[%s3 + $0x68] sm:$0xf]
    %v1065 = vld [vmem:[%s3 + $0x6c] sm:$0xf]
    %v1066 = vld [vmem:[%s3 + $0x70] sm:$0xf]
    %v1067 = vld [vmem:[%s3 + $0x74] sm:$0xf]
    %v1068 = vld [vmem:[%s3 + $0x78] sm:$0xf]
    %v1069 = vld [vmem:[%s3 + $0x7c] sm:$0xf]
    %v1070 = vld [vmem:[%s4] sm:$0x1]
    %v1072 = vperm.slane %v1070, 0
    %v1106 = vunpack.c.l.b16 %v1038
    %v1107 = vunpack.c.l.b16 %v1039
    %v1108 = vunpack.c.l.b16 %v1040
    %v1109 = vunpack.c.l.b16 %v1041
    %v1110 = vunpack.c.l.b16 %v1042
    %v1111 = vunpack.c.l.b16 %v1043
    %v1112 = vunpack.c.l.b16 %v1044
    %v1113 = vunpack.c.l.b16 %v1045
    %v1114 = vunpack.c.l.b16 %v1046
    %v1115 = vunpack.c.l.b16 %v1047
    %v1116 = vunpack.c.l.b16 %v1048
    %v1117 = vunpack.c.l.b16 %v1049
    %v1118 = vunpack.c.l.b16 %v1050
    %v1119 = vunpack.c.l.b16 %v1051
    %v1120 = vunpack.c.l.b16 %v1052
    %v1121 = vunpack.c.l.b16 %v1053
    %v1122 = vunpack.c.l.b16 %v1054
    %v1123 = vunpack.c.l.b16 %v1055
    %v1124 = vunpack.c.l.b16 %v1056
    %v1125 = vunpack.c.l.b16 %v1057
    %v1126 = vunpack.c.l.b16 %v1058
    %v1127 = vunpack.c.l.b16 %v1059
    %v1128 = vunpack.c.l.b16 %v1060
    %v1129 = vunpack.c.l.b16 %v1061
    %v1130 = vunpack.c.l.b16 %v1062
    %v1131 = vunpack.c.l.b16 %v1063
    %v1132 = vunpack.c.l.b16 %v1064
    %v1133 = vunpack.c.l.b16 %v1065
    %v1134 = vunpack.c.l.b16 %v1066
    %v1135 = vunpack.c.l.b16 %v1067
    %v1136 = vunpack.c.l.b16 %v1068
    %v1137 = vunpack.c.l.b16 %v1069
    %v1138 = vpack.c.b16 %v1107, %v1106
    %v1139 = vpack.c.b16 %v1109, %v1108
    %v1140 = vpack.c.b16 %v1111, %v1110
    %v1141 = vpack.c.b16 %v1113, %v1112
    %v1142 = vpack.c.b16 %v1115, %v1114
    %v1143 = vpack.c.b16 %v1117, %v1116
    %v1144 = vpack.c.b16 %v1119, %v1118
    %v1145 = vpack.c.b16 %v1121, %v1120
    %v1146 = vpack.c.b16 %v1123, %v1122
    %v1147 = vpack.c.b16 %v1125, %v1124
    %v1148 = vpack.c.b16 %v1127, %v1126
    %v1149 = vpack.c.b16 %v1129, %v1128
    %v1150 = vpack.c.b16 %v1131, %v1130
    %v1151 = vpack.c.b16 %v1133, %v1132
    %v1152 = vpack.c.b16 %v1135, %v1134
    %v1153 = vpack.c.b16 %v1137, %v1136
    %1170 = vmatpush.bf16.msra.mxu0 %v1145
    %1171 = vmatpush.bf16.msra.mxu0 %v1144
    %1172 = vmatpush.bf16.msra.mxu0 %v1143
    %1173 = vmatpush.bf16.msra.mxu0 %v1142
    %1174 = vmatpush.bf16.msra.mxu0 %v1141
    %1175 = vmatpush.bf16.msra.mxu0 %v1140
    %1176 = vmatpush.bf16.msra.mxu0 %v1139
    %1177 = vmatpush.bf16.msra.mxu0 %v1138
    %1178 = vmatmul.bf16.gmra.mxu0 %v1036
    %v1179 = vpop.f32.mrf.mxu0
    %v1180 = vadd.f32 %v1072, %v1179
    %v1181 = vpop.f32.mrf.mxu0
    %1182 = vdwg.mxu0
    %1183 = vmatpush.bf16.msra.mxu0 %v1153
    %1184 = vmatpush.bf16.msra.mxu0 %v1152
    %1185 = vmatpush.bf16.msra.mxu0 %v1151
    %1186 = vmatpush.bf16.msra.mxu0 %v1150
    %1187 = vmatpush.bf16.msra.mxu0 %v1149
    %1188 = vmatpush.bf16.msra.mxu0 %v1148
    %1189 = vmatpush.bf16.msra.mxu0 %v1147
    %1190 = vmatpush.bf16.msra.mxu0 %v1146
    %1191 = vmatmul.bf16.gmra.mxu0 %v1037
    %v1192 = vpop.f32.mrf.mxu0
    %v1193 = vadd.f32 %v1180, %v1192
    %v1194 = vpop.f32.mrf.mxu0
    %1195 = vdwg.mxu0
    %1196 = vst [vmem:[%s5] sm:$0xff] %v1193
    // Predicated region
    $region26: #{model_wrapper_forward.1} parent=1 // pred_check
      _
    $region27: #{model_wrapper_forward.1} parent=1 // pred_check_branch
      %1198 = sbr.rel (0) target = $region29
    $region28: #{model_wrapper_forward.1} parent=1 // pred_region
      _
    $region29: #{model_wrapper_forward.1} parent=1 // pred_fallthru
      _
    // Predicated region
    $region30: #{model_wrapper_forward.1} parent=1 // pred_check
      _
    $region31: #{model_wrapper_forward.1} parent=1 // pred_check_branch
      %1200 = sbr.rel (0) target = $region33
    $region32: #{model_wrapper_forward.1} parent=1 // pred_region
      _
    $region33: #{model_wrapper_forward.1} parent=1 // pred_fallthru
      _
    %1201 = vsyncpa [#allocation3], 1

</llo_original>
